<compile_context>
chip_gen: v6e
topology: v6e:2x2x1
jax: 0.10.0
libtpu: 0.0.40
codegen_flags: <defaults>
</compile_context>

<pallas_src>
import functools

import jax
import jax.numpy as jnp
import numpy as np
from jax import lax
from jax.experimental import pallas as pl
from jax.experimental.pallas import tpu as pltpu


# --------------------------------------------------------------------------
# Fused kernel: gather -> mask -> linear -> LayerNorm -> add (padded) char.
# --------------------------------------------------------------------------

def _flat_embed_kernel(ids_ref,     # SMEM [B, W] int32   (scalar prefetch)
                       tbl_ref,     # VMEM [V, Ew]        (resident w2v table)
                       wm_ref,      # VMEM [tw, 1]        word mask tile
                       ch_ref,      # VMEM [tw, H]        char hidden tile (clamped block)
                       cm_ref,      # VMEM [tw, 1]        char mask tile   (clamped block)
                       w_ref,       # VMEM [Ew, H]        w2v_linear weight
                       b_ref,       # VMEM [1, H]         w2v_linear bias
                       g_ref,       # VMEM [1, H]         LN gamma
                       beta_ref,    # VMEM [1, H]         LN beta
                       o_ref,       # VMEM [tw, H]        output tile
                       emb_ref,     # VMEM [tw, Ew]       scratch: gathered embeddings
                       *, eps, tw, W, C, V):
    b = pl.program_id(0)
    t = pl.program_id(1)
    row0 = t * tw

    # ---- fused W2V embedding gather (table in VMEM, ids in SMEM) ----
    def gather_row(r, carry):
        w_idx = jnp.minimum(row0 + r, W - 1)            # clamp overhang rows of a partial tile
        tok = jnp.clip(ids_ref[b, w_idx], 0, V - 1)     # guard out-of-range ids (no OOB access)
        emb_ref[pl.ds(r, 1), :] = tbl_ref[pl.ds(tok, 1), :]
        return carry
    lax.fori_loop(0, tw, gather_row, 0, unroll=tw <= 64)

    # ---- word mask; zero out overhang rows of a partial word tile ----
    rows = row0 + lax.broadcasted_iota(jnp.int32, (tw, 1), 0)
    wm = jnp.where(rows < W, wm_ref[...], 0.0)          # [tw, 1]

    # ---- w2v_linear + mask -> LayerNorm ----
    # Binary mask: ((emb*wm) @ W + b) * wm == (emb @ W + b) * wm, so mask once.
    y = jnp.dot(emb_ref[...], w_ref[...],
                preferred_element_type=jnp.float32) + b_ref[...]   # [tw, H]
    y = y * wm
    # dropout: identity in eval mode
    mu = jnp.mean(y, axis=-1, keepdims=True)
    var = jnp.mean(jnp.square(y - mu), axis=-1, keepdims=True)
    y = (y - mu) * lax.rsqrt(var + eps)
    y = y * g_ref[...] + beta_ref[...]

    # ---- add masked char vectors; zero-padding to word_len done implicitly ----
    @pl.when(row0 < C)
    def _():
        cv = jnp.where(rows < C, ch_ref[...] * cm_ref[...], 0.0)
        o_ref[...] = (y + cv).astype(o_ref.dtype)

    @pl.when(row0 >= C)
    def _():
        o_ref[...] = y.astype(o_ref.dtype)


# --------------------------------------------------------------------------
# Wrapper
# --------------------------------------------------------------------------

def flat_embedding(char_hidden, char_mask, word_ids, word_mask, params,
                   *, eps=1e-6, max_rows_per_tile=512):
    B, C, H = char_hidden.shape
    W = word_ids.shape[1]
    V, Ew = params["w2v"].shape
    assert W >= C, "word sequence must be at least as long as the char sequence"

    table_bytes = V * Ew * 4
    if table_bytes > 24 * 1024 * 1024:
        # TODO(synk): HBM-resident table + in-kernel DMA gather for large vocabularies.
        raise NotImplementedError("w2v table too large for the VMEM-resident gather path")

    # Row tile: multiple of 8 (sublane-legal for both the W- and C-length streams,
    # since C != W in general) and as large as feasible to amortize per-step overhead.
    tw = min(max_rows_per_tile, max(8, (W // 8) * 8))
    n_t = pl.cdiv(W, tw)
    n_char_blocks = pl.cdiv(C, tw)

    wmask = word_mask.astype(jnp.float32).reshape(B, W, 1)
    cmask = char_mask.astype(jnp.float32).reshape(B, C, 1)

    kernel = functools.partial(_flat_embed_kernel, eps=eps, tw=tw, W=W, C=C, V=V)

    def _cblk(t):
        # Clamp the char block index so tiles past the char region still request
        # a valid (but unused) block.
        return jnp.minimum(t, n_char_blocks - 1)

    out = pl.pallas_call(
        kernel,
        out_shape=jax.ShapeDtypeStruct((B, W, H), jnp.float32),
        grid_spec=pltpu.PrefetchScalarGridSpec(
            num_scalar_prefetch=1,
            grid=(B, n_t),
            in_specs=[
                pl.BlockSpec((V, Ew), lambda b, t, ids: (0, 0)),                  # w2v table
                pl.BlockSpec((None, tw, 1), lambda b, t, ids: (b, t, 0)),         # word mask
                pl.BlockSpec((None, tw, H), lambda b, t, ids: (b, _cblk(t), 0)),  # char hidden
                pl.BlockSpec((None, tw, 1), lambda b, t, ids: (b, _cblk(t), 0)),  # char mask
                pl.BlockSpec((Ew, H), lambda b, t, ids: (0, 0)),                  # w2v_linear W
                pl.BlockSpec((1, H), lambda b, t, ids: (0, 0)),                   # bias
                pl.BlockSpec((1, H), lambda b, t, ids: (0, 0)),                   # LN gamma
                pl.BlockSpec((1, H), lambda b, t, ids: (0, 0)),                   # LN beta
            ],
            out_specs=pl.BlockSpec((None, tw, H), lambda b, t, ids: (b, t, 0)),
            scratch_shapes=[pltpu.VMEM((tw, Ew), jnp.float32)],
        ),
        compiler_params=pltpu.CompilerParams(
            dimension_semantics=("parallel", "parallel")),
    )(word_ids.astype(jnp.int32),
      params["w2v"], wmask, char_hidden, cmask,
      params["w"], params["b"].reshape(1, H),
      params["gamma"].reshape(1, H), params["beta"].reshape(1, H))
    return out


# --------------------------------------------------------------------------
# Pure-JAX reference (mirrors the torch forward, eval mode)
# --------------------------------------------------------------------------

def reference(char_hidden, char_mask, word_ids, word_mask, params, eps=1e-6):
    B, C, H = char_hidden.shape
    W = word_ids.shape[1]
    char_vec = char_hidden * char_mask[..., None]
    word_vec = params["w2v"][word_ids] * word_mask[..., None]
    word_vec = (word_vec @ params["w"] + params["b"]) * word_mask[..., None]
    mu = word_vec.mean(-1, keepdims=True)
    var = ((word_vec - mu) ** 2).mean(-1, keepdims=True)
    word_vec = (word_vec - mu) / jnp.sqrt(var + eps)
    word_vec = word_vec * params["gamma"] + params["beta"]
    char_vec = jnp.concatenate(
        [char_vec, jnp.zeros((B, W - C, H), char_vec.dtype)], axis=1)
    return char_vec + word_vec


# --------------------------------------------------------------------------
# main
# --------------------------------------------------------------------------

if __name__ == "__main__":
    B, C, W, H, Ew, V = 2, 8, 12, 32, 64, 64

    rng = jax.random.PRNGKey(0)
    ks = jax.random.split(rng, 10)

    # BERT last_hidden_state stand-in (see TODO at top of file)
    char_hidden = jax.random.normal(ks[0], (B, C, H), jnp.float32)
    char_mask = jnp.concatenate(
        [jnp.ones((1, C), jnp.float32),
         jnp.concatenate([jnp.ones((1, C - 2), jnp.float32),
                          jnp.zeros((1, 2), jnp.float32)], axis=1)], axis=0)

    word_ids = jax.random.randint(ks[1], (B, W), 0, V, jnp.int32)
    word_mask = jnp.concatenate(
        [jnp.ones((1, W), jnp.float32),
         jnp.concatenate([jnp.ones((1, W - 3), jnp.float32),
                          jnp.zeros((1, 3), jnp.float32)], axis=1)], axis=0)

    params = {
        "w2v": jax.random.normal(ks[2], (V, Ew), jnp.float32),          # W2V table
        "w": 0.1 * jax.random.normal(ks[3], (Ew, H), jnp.float32),      # w2v_linear
        "b": 0.02 * jax.random.normal(ks[4], (H,), jnp.float32),
        "gamma": 1.0 + 0.05 * jax.random.normal(ks[5], (H,), jnp.float32),
        "beta": 0.02 * jax.random.normal(ks[6], (H,), jnp.float32),
    }

    out = flat_embedding(char_hidden, char_mask, word_ids, word_mask, params)
    out = jax.block_until_ready(out)

    ref = reference(char_hidden, char_mask, word_ids, word_mask, params)
    assert out.shape == (B, W, H)
    np.testing.assert_allclose(np.asarray(out), np.asarray(ref),
                               rtol=5e-5, atol=5e-5)

    print("KERNEL_OK")
</pallas_src>

<mosaic_0001>
module attributes {stable_mosaic.version = 11 : i64} {
  func.func @_flat_embed_kernel(%arg0: i32, %arg1: i32, %arg2: memref<2x12xi32, #tpu.memory_space<smem>>, %arg3: memref<64x64xf32, #tpu.memory_space<vmem>>, %arg4: memref<1x8x1xf32, #tpu.memory_space<vmem>>, %arg5: memref<1x8x32xf32, #tpu.memory_space<vmem>>, %arg6: memref<1x8x1xf32, #tpu.memory_space<vmem>>, %arg7: memref<64x32xf32, #tpu.memory_space<vmem>>, %arg8: memref<1x32xf32, #tpu.memory_space<vmem>>, %arg9: memref<1x32xf32, #tpu.memory_space<vmem>>, %arg10: memref<1x32xf32, #tpu.memory_space<vmem>>, %arg11: memref<1x8x32xf32, #tpu.memory_space<vmem>>, %arg12: memref<8x64xf32, #tpu.memory_space<vmem>>) attributes {dimension_semantics = [#tpu.dimension_semantics<parallel>, #tpu.dimension_semantics<parallel>], iteration_bounds = array<i64: 2, 2>, scalar_prefetch = 1 : i64, scratch_operands = 1 : i64, tpu.core_type = #tpu.core_type<tc>, window_params = [{pipeline_mode = #tpu.pipeline_mode<synchronous>, transform_indices = @transform_0, window_bounds = array<i64: 64, 64>}, {transform_indices = @transform_1, window_bounds = array<i64: 1, 8, 1>}, {transform_indices = @transform_2, window_bounds = array<i64: 1, 8, 32>}, {transform_indices = @transform_3, window_bounds = array<i64: 1, 8, 1>}, {pipeline_mode = #tpu.pipeline_mode<synchronous>, transform_indices = @transform_4, window_bounds = array<i64: 64, 32>}, {pipeline_mode = #tpu.pipeline_mode<synchronous>, transform_indices = @transform_5, window_bounds = array<i64: 1, 32>}, {pipeline_mode = #tpu.pipeline_mode<synchronous>, transform_indices = @transform_6, window_bounds = array<i64: 1, 32>}, {pipeline_mode = #tpu.pipeline_mode<synchronous>, transform_indices = @transform_7, window_bounds = array<i64: 1, 32>}, {transform_indices = @transform_8, window_bounds = array<i64: 1, 8, 32>}]} {
    %c8_i32 = arith.constant 8 : i32
    %0 = arith.muli %arg1, %c8_i32 : i32
    %c0_i32 = arith.constant 0 : i32
    %1 = arith.addi %0, %c0_i32 : i32
    %c11_i32 = arith.constant 11 : i32
    %2 = arith.minsi %1, %c11_i32 : i32
    %3 = arith.index_cast %arg0 : i32 to index
    %4 = arith.index_cast %2 : i32 to index
    %5 = memref.load %arg2[%3, %4] : memref<2x12xi32, #tpu.memory_space<smem>>
    %c0_i32_0 = arith.constant 0 : i32
    %c63_i32 = arith.constant 63 : i32
    %6 = arith.maxsi %c0_i32_0, %5 : i32
    %7 = arith.minsi %c63_i32, %6 : i32
    %8 = arith.index_cast %7 : i32 to index
    %c0 = arith.constant 0 : index
    %9 = vector.load %arg3[%8, %c0] : memref<64x64xf32, #tpu.memory_space<vmem>>, vector<1x64xf32>
    %10 = arith.index_cast %c0_i32 : i32 to index
    %c0_1 = arith.constant 0 : index
    %11 = vector.load %arg12[%10, %c0_1] : memref<8x64xf32, #tpu.memory_space<vmem>>, vector<1x64xf32>
    tpu.vector_store %arg12[%10, %c0_1], %9 {strides = array<i32>} : memref<8x64xf32, #tpu.memory_space<vmem>>, vector<1x64xf32>,
    %c1_i32 = arith.constant 1 : i32
    %12 = arith.addi %0, %c1_i32 : i32
    %c11_i32_2 = arith.constant 11 : i32
    %13 = arith.minsi %12, %c11_i32_2 : i32
    %14 = arith.index_cast %arg0 : i32 to index
    %15 = arith.index_cast %13 : i32 to index
    %16 = memref.load %arg2[%14, %15] : memref<2x12xi32, #tpu.memory_space<smem>>
    %c0_i32_3 = arith.constant 0 : i32
    %c63_i32_4 = arith.constant 63 : i32
    %17 = arith.maxsi %c0_i32_3, %16 : i32
    %18 = arith.minsi %c63_i32_4, %17 : i32
    %19 = arith.index_cast %18 : i32 to index
    %c0_5 = arith.constant 0 : index
    %20 = vector.load %arg3[%19, %c0_5] : memref<64x64xf32, #tpu.memory_space<vmem>>, vector<1x64xf32>
    %21 = arith.index_cast %c1_i32 : i32 to index
    %c0_6 = arith.constant 0 : index
    %22 = vector.load %arg12[%21, %c0_6] : memref<8x64xf32, #tpu.memory_space<vmem>>, vector<1x64xf32>
    tpu.vector_store %arg12[%21, %c0_6], %20 {strides = array<i32>} : memref<8x64xf32, #tpu.memory_space<vmem>>, vector<1x64xf32>,
    %c2_i32 = arith.constant 2 : i32
    %23 = arith.addi %0, %c2_i32 : i32
    %c11_i32_7 = arith.constant 11 : i32
    %24 = arith.minsi %23, %c11_i32_7 : i32
    %25 = arith.index_cast %arg0 : i32 to index
    %26 = arith.index_cast %24 : i32 to index
    %27 = memref.load %arg2[%25, %26] : memref<2x12xi32, #tpu.memory_space<smem>>
    %c0_i32_8 = arith.constant 0 : i32
    %c63_i32_9 = arith.constant 63 : i32
    %28 = arith.maxsi %c0_i32_8, %27 : i32
    %29 = arith.minsi %c63_i32_9, %28 : i32
    %30 = arith.index_cast %29 : i32 to index
    %c0_10 = arith.constant 0 : index
    %31 = vector.load %arg3[%30, %c0_10] : memref<64x64xf32, #tpu.memory_space<vmem>>, vector<1x64xf32>
    %32 = arith.index_cast %c2_i32 : i32 to index
    %c0_11 = arith.constant 0 : index
    %33 = vector.load %arg12[%32, %c0_11] : memref<8x64xf32, #tpu.memory_space<vmem>>, vector<1x64xf32>
    tpu.vector_store %arg12[%32, %c0_11], %31 {strides = array<i32>} : memref<8x64xf32, #tpu.memory_space<vmem>>, vector<1x64xf32>,
    %c3_i32 = arith.constant 3 : i32
    %34 = arith.addi %0, %c3_i32 : i32
    %c11_i32_12 = arith.constant 11 : i32
    %35 = arith.minsi %34, %c11_i32_12 : i32
    %36 = arith.index_cast %arg0 : i32 to index
    %37 = arith.index_cast %35 : i32 to index
    %38 = memref.load %arg2[%36, %37] : memref<2x12xi32, #tpu.memory_space<smem>>
    %c0_i32_13 = arith.constant 0 : i32
    %c63_i32_14 = arith.constant 63 : i32
    %39 = arith.maxsi %c0_i32_13, %38 : i32
    %40 = arith.minsi %c63_i32_14, %39 : i32
    %41 = arith.index_cast %40 : i32 to index
    %c0_15 = arith.constant 0 : index
    %42 = vector.load %arg3[%41, %c0_15] : memref<64x64xf32, #tpu.memory_space<vmem>>, vector<1x64xf32>
    %43 = arith.index_cast %c3_i32 : i32 to index
    %c0_16 = arith.constant 0 : index
    %44 = vector.load %arg12[%43, %c0_16] : memref<8x64xf32, #tpu.memory_space<vmem>>, vector<1x64xf32>
    tpu.vector_store %arg12[%43, %c0_16], %42 {strides = array<i32>} : memref<8x64xf32, #tpu.memory_space<vmem>>, vector<1x64xf32>,
    %c4_i32 = arith.constant 4 : i32
    %45 = arith.addi %0, %c4_i32 : i32
    %c11_i32_17 = arith.constant 11 : i32
    %46 = arith.minsi %45, %c11_i32_17 : i32
    %47 = arith.index_cast %arg0 : i32 to index
    %48 = arith.index_cast %46 : i32 to index
    %49 = memref.load %arg2[%47, %48] : memref<2x12xi32, #tpu.memory_space<smem>>
    %c0_i32_18 = arith.constant 0 : i32
    %c63_i32_19 = arith.constant 63 : i32
    %50 = arith.maxsi %c0_i32_18, %49 : i32
    %51 = arith.minsi %c63_i32_19, %50 : i32
    %52 = arith.index_cast %51 : i32 to index
    %c0_20 = arith.constant 0 : index
    %53 = vector.load %arg3[%52, %c0_20] : memref<64x64xf32, #tpu.memory_space<vmem>>, vector<1x64xf32>
    %54 = arith.index_cast %c4_i32 : i32 to index
    %c0_21 = arith.constant 0 : index
    %55 = vector.load %arg12[%54, %c0_21] : memref<8x64xf32, #tpu.memory_space<vmem>>, vector<1x64xf32>
    tpu.vector_store %arg12[%54, %c0_21], %53 {strides = array<i32>} : memref<8x64xf32, #tpu.memory_space<vmem>>, vector<1x64xf32>,
    %c5_i32 = arith.constant 5 : i32
    %56 = arith.addi %0, %c5_i32 : i32
    %c11_i32_22 = arith.constant 11 : i32
    %57 = arith.minsi %56, %c11_i32_22 : i32
    %58 = arith.index_cast %arg0 : i32 to index
    %59 = arith.index_cast %57 : i32 to index
    %60 = memref.load %arg2[%58, %59] : memref<2x12xi32, #tpu.memory_space<smem>>
    %c0_i32_23 = arith.constant 0 : i32
    %c63_i32_24 = arith.constant 63 : i32
    %61 = arith.maxsi %c0_i32_23, %60 : i32
    %62 = arith.minsi %c63_i32_24, %61 : i32
    %63 = arith.index_cast %62 : i32 to index
    %c0_25 = arith.constant 0 : index
    %64 = vector.load %arg3[%63, %c0_25] : memref<64x64xf32, #tpu.memory_space<vmem>>, vector<1x64xf32>
    %65 = arith.index_cast %c5_i32 : i32 to index
    %c0_26 = arith.constant 0 : index
    %66 = vector.load %arg12[%65, %c0_26] : memref<8x64xf32, #tpu.memory_space<vmem>>, vector<1x64xf32>
    tpu.vector_store %arg12[%65, %c0_26], %64 {strides = array<i32>} : memref<8x64xf32, #tpu.memory_space<vmem>>, vector<1x64xf32>,
    %c6_i32 = arith.constant 6 : i32
    %67 = arith.addi %0, %c6_i32 : i32
    %c11_i32_27 = arith.constant 11 : i32
    %68 = arith.minsi %67, %c11_i32_27 : i32
    %69 = arith.index_cast %arg0 : i32 to index
    %70 = arith.index_cast %68 : i32 to index
    %71 = memref.load %arg2[%69, %70] : memref<2x12xi32, #tpu.memory_space<smem>>
    %c0_i32_28 = arith.constant 0 : i32
    %c63_i32_29 = arith.constant 63 : i32
    %72 = arith.maxsi %c0_i32_28, %71 : i32
    %73 = arith.minsi %c63_i32_29, %72 : i32
    %74 = arith.index_cast %73 : i32 to index
    %c0_30 = arith.constant 0 : index
    %75 = vector.load %arg3[%74, %c0_30] : memref<64x64xf32, #tpu.memory_space<vmem>>, vector<1x64xf32>
    %76 = arith.index_cast %c6_i32 : i32 to index
    %c0_31 = arith.constant 0 : index
    %77 = vector.load %arg12[%76, %c0_31] : memref<8x64xf32, #tpu.memory_space<vmem>>, vector<1x64xf32>
    tpu.vector_store %arg12[%76, %c0_31], %75 {strides = array<i32>} : memref<8x64xf32, #tpu.memory_space<vmem>>, vector<1x64xf32>,
    %c7_i32 = arith.constant 7 : i32
    %78 = arith.addi %0, %c7_i32 : i32
    %c11_i32_32 = arith.constant 11 : i32
    %79 = arith.minsi %78, %c11_i32_32 : i32
    %80 = arith.index_cast %arg0 : i32 to index
    %81 = arith.index_cast %79 : i32 to index
    %82 = memref.load %arg2[%80, %81] : memref<2x12xi32, #tpu.memory_space<smem>>
    %c0_i32_33 = arith.constant 0 : i32
    %c63_i32_34 = arith.constant 63 : i32
    %83 = arith.maxsi %c0_i32_33, %82 : i32
    %84 = arith.minsi %c63_i32_34, %83 : i32
    %85 = arith.index_cast %84 : i32 to index
    %c0_35 = arith.constant 0 : index
    %86 = vector.load %arg3[%85, %c0_35] : memref<64x64xf32, #tpu.memory_space<vmem>>, vector<1x64xf32>
    %87 = arith.index_cast %c7_i32 : i32 to index
    %c0_36 = arith.constant 0 : index
    %88 = vector.load %arg12[%87, %c0_36] : memref<8x64xf32, #tpu.memory_space<vmem>>, vector<1x64xf32>
    tpu.vector_store %arg12[%87, %c0_36], %86 {strides = array<i32>} : memref<8x64xf32, #tpu.memory_space<vmem>>, vector<1x64xf32>,
    %c8_i32_37 = arith.constant 8 : i32
    %89 = tpu.iota {dimensions = array<i32: 0>} : vector<8x1xi32>
    %90 = vector.broadcast %0 : i32 to vector<8x1xi32>
    %91 = arith.addi %90, %89 : vector<8x1xi32>
    %c12_i32 = arith.constant 12 : i32
    %92 = vector.broadcast %c12_i32 : i32 to vector<8x1xi32>
    %93 = arith.cmpi slt, %91, %92 : vector<8x1xi32>
    %c0_38 = arith.constant 0 : index
    %c0_39 = arith.constant 0 : index
    %c0_40 = arith.constant 0 : index
    %94 = vector.load %arg4[%c0_38, %c0_39, %c0_40] : memref<1x8x1xf32, #tpu.memory_space<vmem>>, vector<1x8x1xf32>
    %95 = vector.shape_cast %94 : vector<1x8x1xf32> to vector<8x1xf32>
    %cst = arith.constant 0.000000e+00 : f32
    %96 = vector.broadcast %cst : f32 to vector<8x1xf32>
    %97 = arith.select %93, %95, %96 : vector<8x1xi1>, vector<8x1xf32>
    %c0_41 = arith.constant 0 : index
    %c0_42 = arith.constant 0 : index
    %98 = vector.load %arg12[%c0_41, %c0_42] : memref<8x64xf32, #tpu.memory_space<vmem>>, vector<8x64xf32>
    %c0_43 = arith.constant 0 : index
    %c0_44 = arith.constant 0 : index
    %99 = vector.load %arg7[%c0_43, %c0_44] : memref<64x32xf32, #tpu.memory_space<vmem>>, vector<64x32xf32>
    %cst_45 = arith.constant dense<0.000000e+00> : vector<8x32xf32>
    %100 = tpu.matmul %98, %99, %cst_45 {dimension_numbers = #tpu.dot_dimension_numbers<[1], [0], [0], [1], [0, 0, 1, 1], [], []>} : vector<8x64xf32>, vector<64x32xf32>, vector<8x32xf32> -> vector<8x32xf32>
    %c0_46 = arith.constant 0 : index
    %c0_47 = arith.constant 0 : index
    %101 = vector.load %arg8[%c0_46, %c0_47] : memref<1x32xf32, #tpu.memory_space<vmem>>, vector<1x32xf32>
    %102 = vector.broadcast %101 : vector<1x32xf32> to vector<8x32xf32>
    %103 = arith.addf %100, %102 : vector<8x32xf32>
    %104 = vector.broadcast %97 : vector<8x1xf32> to vector<8x32xf32>
    %105 = arith.mulf %103, %104 : vector<8x32xf32>
    %cst_48 = arith.constant dense<0.000000e+00> : vector<8xf32>
    %106 = vector.multi_reduction <add>, %105, %cst_48 [1] : vector<8x32xf32> to vector<8xf32>
    %107 = vector.shape_cast %106 : vector<8xf32> to vector<8x1xf32>
    %cst_49 = arith.constant 3.200000e+01 : f32
    %108 = vector.broadcast %cst_49 : f32 to vector<8x1xf32>
    %109 = arith.divf %107, %108 : vector<8x1xf32>
    %110 = vector.broadcast %109 : vector<8x1xf32> to vector<8x32xf32>
    %111 = arith.subf %105, %110 : vector<8x32xf32>
    %112 = arith.mulf %111, %111 : vector<8x32xf32>
    %cst_50 = arith.constant dense<0.000000e+00> : vector<8xf32>
    %113 = vector.multi_reduction <add>, %112, %cst_50 [1] : vector<8x32xf32> to vector<8xf32>
    %114 = vector.shape_cast %113 : vector<8xf32> to vector<8x1xf32>
    %cst_51 = arith.constant 3.200000e+01 : f32
    %115 = vector.broadcast %cst_51 : f32 to vector<8x1xf32>
    %116 = arith.divf %114, %115 : vector<8x1xf32>
    %117 = vector.broadcast %109 : vector<8x1xf32> to vector<8x32xf32>
    %118 = arith.subf %105, %117 : vector<8x32xf32>
    %cst_52 = arith.constant 9.99999997E-7 : f32
    %119 = vector.broadcast %cst_52 : f32 to vector<8x1xf32>
    %120 = arith.addf %116, %119 : vector<8x1xf32>
    %121 = math.rsqrt %120 : vector<8x1xf32>
    %122 = vector.broadcast %121 : vector<8x1xf32> to vector<8x32xf32>
    %123 = arith.mulf %118, %122 : vector<8x32xf32>
    %c0_53 = arith.constant 0 : index
    %c0_54 = arith.constant 0 : index
    %124 = vector.load %arg9[%c0_53, %c0_54] : memref<1x32xf32, #tpu.memory_space<vmem>>, vector<1x32xf32>
    %125 = vector.broadcast %124 : vector<1x32xf32> to vector<8x32xf32>
    %126 = arith.mulf %123, %125 : vector<8x32xf32>
    %c0_55 = arith.constant 0 : index
    %c0_56 = arith.constant 0 : index
    %127 = vector.load %arg10[%c0_55, %c0_56] : memref<1x32xf32, #tpu.memory_space<vmem>>, vector<1x32xf32>
    %128 = vector.broadcast %127 : vector<1x32xf32> to vector<8x32xf32>
    %129 = arith.addf %126, %128 : vector<8x32xf32>
    %c8_i32_57 = arith.constant 8 : i32
    %130 = arith.cmpi slt, %0, %c8_i32_57 : i32
    %131 = arith.extui %130 : i1 to i32
    %c0_i32_58 = arith.constant 0 : i32
    %132 = arith.cmpi ne, %131, %c0_i32_58 : i32
    scf.if %132 {
      %c8_i32_61 = arith.constant 8 : i32
      %136 = vector.broadcast %c8_i32_61 : i32 to vector<8x1xi32>
      %137 = arith.cmpi slt, %91, %136 : vector<8x1xi32>
      %c0_62 = arith.constant 0 : index
      %c0_63 = arith.constant 0 : index
      %c0_64 = arith.constant 0 : index
      %138 = vector.load %arg5[%c0_62, %c0_63, %c0_64] : memref<1x8x32xf32, #tpu.memory_space<vmem>>, vector<1x8x32xf32>
      %139 = vector.shape_cast %138 : vector<1x8x32xf32> to vector<8x32xf32>
      %c0_65 = arith.constant 0 : index
      %c0_66 = arith.constant 0 : index
      %c0_67 = arith.constant 0 : index
      %140 = vector.load %arg6[%c0_65, %c0_66, %c0_67] : memref<1x8x1xf32, #tpu.memory_space<vmem>>, vector<1x8x1xf32>
      %141 = vector.shape_cast %140 : vector<1x8x1xf32> to vector<8x1xf32>
      %142 = vector.broadcast %141 : vector<8x1xf32> to vector<8x32xf32>
      %143 = arith.mulf %139, %142 : vector<8x32xf32>
      %cst_68 = arith.constant 0.000000e+00 : f32
      %144 = vector.shape_cast %137 : vector<8x1xi1> to vector<8x1xi1>
      %145 = vector.broadcast %144 : vector<8x1xi1> to vector<8x32xi1>
      %146 = vector.broadcast %cst_68 : f32 to vector<8x32xf32>
      %147 = arith.select %145, %143, %146 : vector<8x32xi1>, vector<8x32xf32>
      %148 = arith.addf %129, %147 : vector<8x32xf32>
      %c0_69 = arith.constant 0 : index
      %c0_70 = arith.constant 0 : index
      %c0_71 = arith.constant 0 : index
      %149 = vector.load %arg11[%c0_69, %c0_70, %c0_71] : memref<1x8x32xf32, #tpu.memory_space<vmem>>, vector<1x8x32xf32>
      %150 = vector.shape_cast %149 : vector<1x8x32xf32> to vector<8x32xf32>
      %151 = vector.shape_cast %148 : vector<8x32xf32> to vector<1x8x32xf32>
      tpu.vector_store %arg11[%c0_69, %c0_70, %c0_71], %151 {strides = array<i32>} : memref<1x8x32xf32, #tpu.memory_space<vmem>>, vector<1x8x32xf32>,
    } else {
    }
    %c8_i32_59 = arith.constant 8 : i32
    %133 = arith.cmpi sge, %0, %c8_i32_59 : i32
    %134 = arith.extui %133 : i1 to i32
    %c0_i32_60 = arith.constant 0 : i32
    %135 = arith.cmpi ne, %134, %c0_i32_60 : i32
    scf.if %135 {
      %c0_61 = arith.constant 0 : index
      %c0_62 = arith.constant 0 : index
      %c0_63 = arith.constant 0 : index
      %136 = vector.load %arg11[%c0_61, %c0_62, %c0_63] : memref<1x8x32xf32, #tpu.memory_space<vmem>>, vector<1x8x32xf32>
      %137 = vector.shape_cast %136 : vector<1x8x32xf32> to vector<8x32xf32>
      %138 = vector.shape_cast %129 : vector<8x32xf32> to vector<1x8x32xf32>
      tpu.vector_store %arg11[%c0_61, %c0_62, %c0_63], %138 {strides = array<i32>} : memref<1x8x32xf32, #tpu.memory_space<vmem>>, vector<1x8x32xf32>,
    } else {
    }
    return
  }
  func.func @transform_0(%arg0: i32, %arg1: i32, %arg2: memref<2x12xi32, #tpu.memory_space<smem>>) -> (i32, i32) {
    %c0_i32 = arith.constant 0 : i32
    %c0_i32_0 = arith.constant 0 : i32
    %c0_i32_1 = arith.constant 0 : i32
    return %c0_i32, %c0_i32_0 : i32, i32
  }
  func.func @transform_1(%arg0: i32, %arg1: i32, %arg2: memref<2x12xi32, #tpu.memory_space<smem>>) -> (i32, i32, i32) {
    %c0_i32 = arith.constant 0 : i32
    %c0_i32_0 = arith.constant 0 : i32
    return %arg0, %arg1, %c0_i32 : i32, i32, i32
  }
  func.func @transform_2(%arg0: i32, %arg1: i32, %arg2: memref<2x12xi32, #tpu.memory_space<smem>>) -> (i32, i32, i32) {
    %c0_i32 = arith.constant 0 : i32
    %0 = arith.minsi %arg1, %c0_i32 : i32
    %c0_i32_0 = arith.constant 0 : i32
    %c0_i32_1 = arith.constant 0 : i32
    return %arg0, %0, %c0_i32_0 : i32, i32, i32
  }
  func.func @transform_3(%arg0: i32, %arg1: i32, %arg2: memref<2x12xi32, #tpu.memory_space<smem>>) -> (i32, i32, i32) {
    %c0_i32 = arith.constant 0 : i32
    %0 = arith.minsi %arg1, %c0_i32 : i32
    %c0_i32_0 = arith.constant 0 : i32
    %c0_i32_1 = arith.constant 0 : i32
    return %arg0, %0, %c0_i32_0 : i32, i32, i32
  }
  func.func @transform_4(%arg0: i32, %arg1: i32, %arg2: memref<2x12xi32, #tpu.memory_space<smem>>) -> (i32, i32) {
    %c0_i32 = arith.constant 0 : i32
    %c0_i32_0 = arith.constant 0 : i32
    %c0_i32_1 = arith.constant 0 : i32
    return %c0_i32, %c0_i32_0 : i32, i32
  }
  func.func @transform_5(%arg0: i32, %arg1: i32, %arg2: memref<2x12xi32, #tpu.memory_space<smem>>) -> (i32, i32) {
    %c0_i32 = arith.constant 0 : i32
    %c0_i32_0 = arith.constant 0 : i32
    %c0_i32_1 = arith.constant 0 : i32
    return %c0_i32, %c0_i32_0 : i32, i32
  }
  func.func @transform_6(%arg0: i32, %arg1: i32, %arg2: memref<2x12xi32, #tpu.memory_space<smem>>) -> (i32, i32) {
    %c0_i32 = arith.constant 0 : i32
    %c0_i32_0 = arith.constant 0 : i32
    %c0_i32_1 = arith.constant 0 : i32
    return %c0_i32, %c0_i32_0 : i32, i32
  }
  func.func @transform_7(%arg0: i32, %arg1: i32, %arg2: memref<2x12xi32, #tpu.memory_space<smem>>) -> (i32, i32) {
    %c0_i32 = arith.constant 0 : i32
    %c0_i32_0 = arith.constant 0 : i32
    %c0_i32_1 = arith.constant 0 : i32
    return %c0_i32, %c0_i32_0 : i32, i32
  }
  func.func @transform_8(%arg0: i32, %arg1: i32, %arg2: memref<2x12xi32, #tpu.memory_space<smem>>) -> (i32, i32, i32) {
    %c0_i32 = arith.constant 0 : i32
    %c0_i32_0 = arith.constant 0 : i32
    return %arg0, %arg1, %c0_i32 : i32, i32, i32
  }
}

</mosaic_0001>

<llo_original>
// kernel: tpu_custom_call.1
$region0: #{tpu_custom_call.1}
  #allocation0 [shape = 'u32[]', space=smem, size = 0x4, offset = 0x4, fixed_abs, tag = 'smem constant byte address 0x4 - core index']
  #allocation1 [shape = 'u32[144,128]{1,0:T(1,128)}', space=vmem, size = 0x12000, scoped, tag = 'internal scratch']
  #allocation2 [shape = 'f32[8,64]{1,0:T(8,128)}', space=vmem, size = 0x1000, scoped, tag = 'scratch operand']
  #allocation3 [shape = 's32[1]{0}', space=sflag, size = 0x4, scoped, tag = 'scoped memory for tpu_custom_call.1']
  #allocation4 [shape = 'u8[1024]{0}', space=smem, size = 0x400, scoped, tag = 'prefetched SMEM operand 0']
  %s0 = inlined_call_operand.vmem [shape: s32[2,12], index: 0, kind: input, shape index: {}]
  %s1 = inlined_call_operand.vmem [shape: f32[64,64], index: 1, kind: input, shape index: {}]
  %s2 = inlined_call_operand.vmem [shape: f32[2,12,1], index: 2, kind: input, shape index: {}]
  %s3 = inlined_call_operand.vmem [shape: f32[2,8,32], index: 3, kind: input, shape index: {}]
  %s4 = inlined_call_operand.vmem [shape: f32[2,8,1], index: 4, kind: input, shape index: {}]
  %s5 = inlined_call_operand.vmem [shape: f32[64,32], index: 5, kind: input, shape index: {}]
  %s6 = inlined_call_operand.vmem [shape: f32[1,32], index: 6, kind: input, shape index: {}]
  %s7 = inlined_call_operand.vmem [shape: f32[1,32], index: 7, kind: input, shape index: {}]
  %s8 = inlined_call_operand.vmem [shape: f32[1,32], index: 8, kind: input, shape index: {}]
  %s9 = inlined_call_operand.vmem [shape: f32[2,12,32], index: 9, kind: output, shape index: {}]
  %s10 = sld [smem:[#allocation0]]
  $region73: #{tpu_custom_call.1} parent=0
    _
  %s12 = ssub.s32 1, %s10
  %s13 = scalar_select 0, %s12, %s10
  %s14 = sshll.u32 %s0, 4
  %s15 = int_to_ptr.vmem [resolvable:$true] %s14
  %17 = dma.vmem_to_smem %s15, 32, [#allocation4], [#allocation3]
  %18 = dma.done [#allocation3], 32
  %19 = sfence
  loop: start=0, step=1, limit=6
  $region2: #{tpu_custom_call.1} parent=0 // loop_pre_header
    _
  $region3: #{tpu_custom_call.1} parent=0 // loop_header
    %s21 = sphi 0, %s25
    %p22 = scmp.ge.s32.totalorder %s21, 6
    %s28 = sphi 0, %s40
    %s29 = sphi 0, %s36
    %s30 = sphi 0, %s28
    %s31 = sphi 0, %s29
    %s32 = sphi 0, %s30
    %s33 = sphi 0, %s31
    %s41 = sphi 0, %s41
    %s43 = sphi 0, %s41
    %s44 = sphi 0, %s43
    %s58 = sphi 0, %s44
    %s66 = sphi 0, %s68
    %s69 = sphi 0, %s66
    %s70 = sphi 0, %s69
    %s86 = sphi 0, %s70
    %s98 = sphi 0, %s100
    %s101 = sphi 0, %s98
    %s102 = sphi 0, %s101
    %s118 = sphi 0, %s102
    %s130 = sphi 0, %s132
    %s133 = sphi 0, %s130
    %s134 = sphi 0, %s133
    %s150 = sphi 0, %s134
    %s154 = sphi 0, %s154
    %s156 = sphi 0, %s154
    %s157 = sphi 0, %s156
    %s171 = sphi 0, %s157
    %s175 = sphi 0, %s175
    %s177 = sphi 0, %s175
    %s178 = sphi 0, %s177
    %s192 = sphi 0, %s178
    %s196 = sphi 0, %s196
    %s198 = sphi 0, %s196
    %s199 = sphi 0, %s198
    %s213 = sphi 0, %s199
    %s217 = sphi 0, %s217
    %s219 = sphi 0, %s217
    %s220 = sphi 0, %s219
    %s234 = sphi 0, %s220
    %s242 = sphi 0, %s244
    %s245 = sphi 0, %s242
    %s246 = sphi 0, %s245
    %s262 = sphi 0, %s246
  $region4: #{tpu_custom_call.1} parent=0 // loop_header_branch
    %24 = sbr.rel (%p22) target = $region8
  $region5: #{tpu_custom_call.1} parent=0 // loop_body
    %s26 = ssub.s32 %s21, 1
    %s27 = ssub.s32 %s21, 2
    %s34 = sadd.s32 1, %s29
    %p35 = scmp.ge.s32.totalorder %s34, 2
    %s36 = scalar_select %p35, 0, %s34
    %s37 = sadd.s32 1, %s28
    %s38 = scalar_select %p35, %s37, %s28
    %p39 = scmp.ge.s32.totalorder %s38, 2
    %s40 = scalar_select %p39, 0, %s38
    %s42 = sadd.s32 %s41, 1
    %p45 = scmp.eq.s32.totalorder %s21, 3
    %p46 = scmp.ne.s32.totalorder %s41, %s43
    %p47 = scmp.eq.s32.totalorder %s21, 0
    %p48 = por %p46, %p47
    %p49 = scmp.ne.s32.totalorder %s41, %s43
    %p50 = scmp.eq.s32.totalorder %s26, 3
    %p51 = por %p49, %p50
    %p52 = scmp.ne.s32.totalorder %s43, %s44
    %p53 = scmp.eq.s32.totalorder %s26, 0
    %p54 = por %p52, %p53
    %p55 = scmp.ne.s32.totalorder %s43, %s44
    %p56 = scmp.eq.s32.totalorder %s27, 3
    %p57 = por %p55, %p56
    %p59 = scmp.ne.s32.totalorder %s44, %s58
    %p60 = scmp.eq.s32.totalorder %s27, 0
    %p61 = por %p59, %p60
    %s62 = ssub.s32 %s28, %s40
    %s63 = ssub.s32 %s29, %s36
    %s64 = sor.u32 %s62, %s63
    %p65 = scmp.eq.s32.totalorder %s64, 0
    %s67 = sadd.s32 %s66, 1
    %s68 = scalar_select %p65, %s66, %s67
    %p71 = pneg %p65
    %p72 = scmp.eq.s32.totalorder %s21, 3
    %p73 = por %p71, %p72
    %p74 = scmp.ne.s32.totalorder %s66, %s69
    %p75 = scmp.eq.s32.totalorder %s21, 0
    %p76 = por %p74, %p75
    %p77 = scmp.ne.s32.totalorder %s66, %s69
    %p78 = scmp.eq.s32.totalorder %s26, 3
    %p79 = por %p77, %p78
    %p80 = scmp.ne.s32.totalorder %s69, %s70
    %p81 = scmp.eq.s32.totalorder %s26, 0
    %p82 = por %p80, %p81
    %p83 = scmp.ne.s32.totalorder %s69, %s70
    %p84 = scmp.eq.s32.totalorder %s27, 3
    %p85 = por %p83, %p84
    %p87 = scmp.ne.s32.totalorder %s70, %s86
    %p88 = scmp.eq.s32.totalorder %s27, 0
    %p89 = por %p87, %p88
    %p90 = scmp.lt.s32.totalorder %s29, 0
    %s91 = scalar_select %p90, %s29, 0
    %p92 = scmp.lt.s32.totalorder %s36, 0
    %s93 = scalar_select %p92, %s36, 0
    %s94 = ssub.s32 %s28, %s40
    %s95 = ssub.s32 %s91, %s93
    %s96 = sor.u32 %s94, %s95
    %p97 = scmp.eq.s32.totalorder %s96, 0
    %s99 = sadd.s32 %s98, 1
    %s100 = scalar_select %p97, %s98, %s99
    %p103 = pneg %p97
    %p104 = scmp.eq.s32.totalorder %s21, 3
    %p105 = por %p103, %p104
    %p106 = scmp.ne.s32.totalorder %s98, %s101
    %p107 = scmp.eq.s32.totalorder %s21, 0
    %p108 = por %p106, %p107
    %p109 = scmp.ne.s32.totalorder %s98, %s101
    %p110 = scmp.eq.s32.totalorder %s26, 3
    %p111 = por %p109, %p110
    %p112 = scmp.ne.s32.totalorder %s101, %s102
    %p113 = scmp.eq.s32.totalorder %s26, 0
    %p114 = por %p112, %p113
    %p115 = scmp.ne.s32.totalorder %s101, %s102
    %p116 = scmp.eq.s32.totalorder %s27, 3
    %p117 = por %p115, %p116
    %p119 = scmp.ne.s32.totalorder %s102, %s118
    %p120 = scmp.eq.s32.totalorder %s27, 0
    %p121 = por %p119, %p120
    %p122 = scmp.lt.s32.totalorder %s29, 0
    %s123 = scalar_select %p122, %s29, 0
    %p124 = scmp.lt.s32.totalorder %s36, 0
    %s125 = scalar_select %p124, %s36, 0
    %s126 = ssub.s32 %s28, %s40
    %s127 = ssub.s32 %s123, %s125
    %s128 = sor.u32 %s126, %s127
    %p129 = scmp.eq.s32.totalorder %s128, 0
    %s131 = sadd.s32 %s130, 1
    %s132 = scalar_select %p129, %s130, %s131
    %p135 = pneg %p129
    %p136 = scmp.eq.s32.totalorder %s21, 3
    %p137 = por %p135, %p136
    %p138 = scmp.ne.s32.totalorder %s130, %s133
    %p139 = scmp.eq.s32.totalorder %s21, 0
    %p140 = por %p138, %p139
    %p141 = scmp.ne.s32.totalorder %s130, %s133
    %p142 = scmp.eq.s32.totalorder %s26, 3
    %p143 = por %p141, %p142
    %p144 = scmp.ne.s32.totalorder %s133, %s134
    %p145 = scmp.eq.s32.totalorder %s26, 0
    %p146 = por %p144, %p145
    %p147 = scmp.ne.s32.totalorder %s133, %s134
    %p148 = scmp.eq.s32.totalorder %s27, 3
    %p149 = por %p147, %p148
    %p151 = scmp.ne.s32.totalorder %s134, %s150
    %p152 = scmp.eq.s32.totalorder %s27, 0
    %p153 = por %p151, %p152
    %s155 = sadd.s32 %s154, 1
    %p158 = scmp.eq.s32.totalorder %s21, 3
    %p159 = scmp.ne.s32.totalorder %s154, %s156
    %p160 = scmp.eq.s32.totalorder %s21, 0
    %p161 = por %p159, %p160
    %p162 = scmp.ne.s32.totalorder %s154, %s156
    %p163 = scmp.eq.s32.totalorder %s26, 3
    %p164 = por %p162, %p163
    %p165 = scmp.ne.s32.totalorder %s156, %s157
    %p166 = scmp.eq.s32.totalorder %s26, 0
    %p167 = por %p165, %p166
    %p168 = scmp.ne.s32.totalorder %s156, %s157
    %p169 = scmp.eq.s32.totalorder %s27, 3
    %p170 = por %p168, %p169
    %p172 = scmp.ne.s32.totalorder %s157, %s171
    %p173 = scmp.eq.s32.totalorder %s27, 0
    %p174 = por %p172, %p173
    %s176 = sadd.s32 %s175, 1
    %p179 = scmp.eq.s32.totalorder %s21, 3
    %p180 = scmp.ne.s32.totalorder %s175, %s177
    %p181 = scmp.eq.s32.totalorder %s21, 0
    %p182 = por %p180, %p181
    %p183 = scmp.ne.s32.totalorder %s175, %s177
    %p184 = scmp.eq.s32.totalorder %s26, 3
    %p185 = por %p183, %p184
    %p186 = scmp.ne.s32.totalorder %s177, %s178
    %p187 = scmp.eq.s32.totalorder %s26, 0
    %p188 = por %p186, %p187
    %p189 = scmp.ne.s32.totalorder %s177, %s178
    %p190 = scmp.eq.s32.totalorder %s27, 3
    %p191 = por %p189, %p190
    %p193 = scmp.ne.s32.totalorder %s178, %s192
    %p194 = scmp.eq.s32.totalorder %s27, 0
    %p195 = por %p193, %p194
    %s197 = sadd.s32 %s196, 1
    %p200 = scmp.eq.s32.totalorder %s21, 3
    %p201 = scmp.ne.s32.totalorder %s196, %s198
    %p202 = scmp.eq.s32.totalorder %s21, 0
    %p203 = por %p201, %p202
    %p204 = scmp.ne.s32.totalorder %s196, %s198
    %p205 = scmp.eq.s32.totalorder %s26, 3
    %p206 = por %p204, %p205
    %p207 = scmp.ne.s32.totalorder %s198, %s199
    %p208 = scmp.eq.s32.totalorder %s26, 0
    %p209 = por %p207, %p208
    %p210 = scmp.ne.s32.totalorder %s198, %s199
    %p211 = scmp.eq.s32.totalorder %s27, 3
    %p212 = por %p210, %p211
    %p214 = scmp.ne.s32.totalorder %s199, %s213
    %p215 = scmp.eq.s32.totalorder %s27, 0
    %p216 = por %p214, %p215
    %s218 = sadd.s32 %s217, 1
    %p221 = scmp.eq.s32.totalorder %s21, 3
    %p222 = scmp.ne.s32.totalorder %s217, %s219
    %p223 = scmp.eq.s32.totalorder %s21, 0
    %p224 = por %p222, %p223
    %p225 = scmp.ne.s32.totalorder %s217, %s219
    %p226 = scmp.eq.s32.totalorder %s26, 3
    %p227 = por %p225, %p226
    %p228 = scmp.ne.s32.totalorder %s219, %s220
    %p229 = scmp.eq.s32.totalorder %s26, 0
    %p230 = por %p228, %p229
    %p231 = scmp.ne.s32.totalorder %s219, %s220
    %p232 = scmp.eq.s32.totalorder %s27, 3
    %p233 = por %p231, %p232
    %p235 = scmp.ne.s32.totalorder %s220, %s234
    %p236 = scmp.eq.s32.totalorder %s27, 0
    %p237 = por %p235, %p236
    %s238 = ssub.s32 %s28, %s40
    %s239 = ssub.s32 %s29, %s36
    %s240 = sor.u32 %s238, %s239
    %p241 = scmp.eq.s32.totalorder %s240, 0
    %s243 = sadd.s32 %s242, 1
    %s244 = scalar_select %p241, %s242, %s243
    %p247 = pneg %p241
    %p248 = scmp.eq.s32.totalorder %s21, 3
    %p249 = por %p247, %p248
    %p250 = scmp.ne.s32.totalorder %s242, %s245
    %p251 = scmp.eq.s32.totalorder %s21, 0
    %p252 = por %p250, %p251
    %p253 = scmp.ne.s32.totalorder %s242, %s245
    %p254 = scmp.eq.s32.totalorder %s26, 3
    %p255 = por %p253, %p254
    %p256 = scmp.ne.s32.totalorder %s245, %s246
    %p257 = scmp.eq.s32.totalorder %s26, 0
    %p258 = por %p256, %p257
    %p259 = scmp.ne.s32.totalorder %s245, %s246
    %p260 = scmp.eq.s32.totalorder %s27, 3
    %p261 = por %p259, %p260
    %p263 = scmp.ne.s32.totalorder %s246, %s262
    %p264 = scmp.eq.s32.totalorder %s27, 0
    %p265 = por %p263, %p264
    %p266 = scmp.le.s32.totalorder 1, %s21
    %p267 = scmp.lt.s32.totalorder %s21, 5
    %p268 = pnand %p266, %p267
    %p269 = pneg %p268
    // Predicated region
    $region9: #{tpu_custom_call.1} parent=5 // pred_check
      _
    $region10: #{tpu_custom_call.1} parent=5 // pred_check_branch
      %271 = sbr.rel (%p268) target = $region12
    $region11: #{tpu_custom_call.1} parent=5 // pred_region
      %s272 = ssub.s32 %s21, 1
      // Predicated region
      $region13: #{tpu_custom_call.1} parent=11 // pred_check
        %p273 = pneg %p54
      $region14: #{tpu_custom_call.1} parent=11 // pred_check_branch
        %275 = sbr.rel (%p273) target = $region16
      $region15: #{tpu_custom_call.1} parent=11 // pred_region
        _
      $region16: #{tpu_custom_call.1} parent=11 // pred_fallthru
        _
      // Predicated region
      $region17: #{tpu_custom_call.1} parent=11 // pred_check
        %p276 = pneg %p167
      $region18: #{tpu_custom_call.1} parent=11 // pred_check_branch
        %278 = sbr.rel (%p276) target = $region20
      $region19: #{tpu_custom_call.1} parent=11 // pred_region
        _
      $region20: #{tpu_custom_call.1} parent=11 // pred_fallthru
        _
      // Predicated region
      $region21: #{tpu_custom_call.1} parent=11 // pred_check
        %p279 = pneg %p188
      $region22: #{tpu_custom_call.1} parent=11 // pred_check_branch
        %281 = sbr.rel (%p279) target = $region24
      $region23: #{tpu_custom_call.1} parent=11 // pred_region
        _
      $region24: #{tpu_custom_call.1} parent=11 // pred_fallthru
        _
      // Predicated region
      $region25: #{tpu_custom_call.1} parent=11 // pred_check
        %p282 = pneg %p209
      $region26: #{tpu_custom_call.1} parent=11 // pred_check_branch
        %284 = sbr.rel (%p282) target = $region28
      $region27: #{tpu_custom_call.1} parent=11 // pred_region
        _
      $region28: #{tpu_custom_call.1} parent=11 // pred_fallthru
        _
      // Predicated region
      $region29: #{tpu_custom_call.1} parent=11 // pred_check
        %p285 = pneg %p230
      $region30: #{tpu_custom_call.1} parent=11 // pred_check_branch
        %287 = sbr.rel (%p285) target = $region32
      $region31: #{tpu_custom_call.1} parent=11 // pred_region
        _
      $region32: #{tpu_custom_call.1} parent=11 // pred_fallthru
        _
    $region12: #{tpu_custom_call.1} parent=5 // pred_fallthru
      _
    %p288 = scmp.lt.s32.totalorder %s21, 4
    // Predicated region
    $region33: #{tpu_custom_call.1} parent=5 // pred_check
      %p289 = pneg %p288
    $region34: #{tpu_custom_call.1} parent=5 // pred_check_branch
      %291 = sbr.rel (%p289) target = $region36
    $region35: #{tpu_custom_call.1} parent=5 // pred_region
      // Predicated region
      $region37: #{tpu_custom_call.1} parent=35 // pred_check
        %p292 = pneg %p76
      $region38: #{tpu_custom_call.1} parent=35 // pred_check_branch
        %294 = sbr.rel (%p292) target = $region40
      $region39: #{tpu_custom_call.1} parent=35 // pred_region
        %p295 = scmp.lt.s32.totalorder %s28, 1
        %s296 = scalar_select %p295, %s28, 1
        %p297 = scmp.lt.s32.totalorder %s29, 1
        %s298 = scalar_select %p297, %s29, 1
        %s299 = smul.addr %s296, 2
        %s300 = sadd.s32 %s298, %s299
        %s301 = smul.addr %s300, 8
        %s302 = scalar_lea.vmem %s2, %s301
      $region40: #{tpu_custom_call.1} parent=35 // pred_fallthru
        _
      // Predicated region
      $region41: #{tpu_custom_call.1} parent=35 // pred_check
        %p303 = pneg %p108
      $region42: #{tpu_custom_call.1} parent=35 // pred_check_branch
        %305 = sbr.rel (%p303) target = $region44
      $region43: #{tpu_custom_call.1} parent=35 // pred_region
        %p306 = scmp.lt.s32.totalorder %s29, 0
        %s307 = scalar_select %p306, %s29, 0
        %p308 = scmp.lt.s32.totalorder %s28, 1
        %s309 = scalar_select %p308, %s28, 1
        %p310 = scmp.lt.s32.totalorder %s307, 0
        %s311 = scalar_select %p310, %s307, 0
        %s312 = sadd.s32 %s311, %s309
        %s313 = smul.addr %s312, 8
        %s314 = scalar_lea.vmem %s3, %s313
        %p315 = scmp.lt.s32.totalorder %s29, 0
        %s316 = scalar_select %p315, %s29, 0
      $region44: #{tpu_custom_call.1} parent=35 // pred_fallthru
        _
      // Predicated region
      $region45: #{tpu_custom_call.1} parent=35 // pred_check
        %p317 = pneg %p140
      $region46: #{tpu_custom_call.1} parent=35 // pred_check_branch
        %319 = sbr.rel (%p317) target = $region48
      $region47: #{tpu_custom_call.1} parent=35 // pred_region
        %p320 = scmp.lt.s32.totalorder %s29, 0
        %s321 = scalar_select %p320, %s29, 0
        %p322 = scmp.lt.s32.totalorder %s28, 1
        %s323 = scalar_select %p322, %s28, 1
        %p324 = scmp.lt.s32.totalorder %s321, 0
        %s325 = scalar_select %p324, %s321, 0
        %s326 = sadd.s32 %s325, %s323
        %s327 = smul.addr %s326, 8
        %s328 = scalar_lea.vmem %s4, %s327
        %p329 = scmp.lt.s32.totalorder %s29, 0
        %s330 = scalar_select %p329, %s29, 0
      $region48: #{tpu_custom_call.1} parent=35 // pred_fallthru
        _
    $region36: #{tpu_custom_call.1} parent=5 // pred_fallthru
      _
    %p331 = scmp.le.s32.totalorder 1, %s21
    %p332 = scmp.lt.s32.totalorder %s21, 5
    %p333 = pnand %p331, %p332
    %p334 = pneg %p333
    // Predicated region
    $region49: #{tpu_custom_call.1} parent=5 // pred_check
      _
    $region50: #{tpu_custom_call.1} parent=5 // pred_check_branch
      %336 = sbr.rel (%p333) target = $region52
    $region51: #{tpu_custom_call.1} parent=5 // pred_region
      %s337 = ssub.s32 %s21, 1
      %p338 = pneg %p54
      %p339 = pneg %p51
      %p340 = scmp.lt.s32.totalorder %s30, 1
      %s341 = scalar_select %p340, %s30, 1
      %p342 = scmp.lt.s32.totalorder %s31, 1
      %s343 = scalar_select %p342, %s31, 1
      %s344 = smul.addr %s341, 2
      %s345 = sadd.s32 %s343, %s344
      %s346 = smul.addr %s345, 8
      %s347 = scalar_lea.vmem %s2, %s346
      %p348 = pneg %p82
      %p349 = pneg %p79
      %p350 = scmp.lt.s32.totalorder %s31, 0
      %s351 = scalar_select %p350, %s31, 0
      %p352 = scmp.lt.s32.totalorder %s30, 1
      %s353 = scalar_select %p352, %s30, 1
      %p354 = scmp.lt.s32.totalorder %s351, 0
      %s355 = scalar_select %p354, %s351, 0
      %s356 = sadd.s32 %s355, %s353
      %s357 = smul.addr %s356, 8
      %s358 = scalar_lea.vmem %s3, %s357
      %p359 = pneg %p114
      %p360 = pneg %p111
      %p361 = scmp.lt.s32.totalorder %s31, 0
      %s362 = scalar_select %p361, %s31, 0
      %p363 = scmp.lt.s32.totalorder %s30, 1
      %s364 = scalar_select %p363, %s30, 1
      %p365 = scmp.lt.s32.totalorder %s362, 0
      %s366 = scalar_select %p365, %s362, 0
      %s367 = sadd.s32 %s366, %s364
      %s368 = smul.addr %s367, 8
      %s369 = scalar_lea.vmem %s4, %s368
      %p370 = pneg %p146
      %p371 = pneg %p143
      %p372 = pneg %p167
      %p373 = pneg %p164
      %p374 = pneg %p188
      %p375 = pneg %p185
      %p376 = pneg %p209
      %p377 = pneg %p206
      %p378 = pneg %p230
      %p379 = pneg %p227
      %p380 = pneg %p258
      %p381 = pneg %p255
      %p382 = scmp.lt.s32.totalorder %s30, 1
      %s383 = scalar_select %p382, %s30, 1
      %p384 = scmp.lt.s32.totalorder %s31, 1
      %s385 = scalar_select %p384, %s31, 1
      %s386 = smul.addr %s383, 2
      %s387 = sadd.s32 %s385, %s386
      %s388 = smul.addr %s387, 8
      %s389 = scalar_lea.vmem %s9, %s388
      %p390 = scmp.lt.s32.totalorder %s30, 1
      %s391 = scalar_select %p390, %s30, 1
      %p392 = scmp.lt.s32.totalorder %s31, 1
      %s393 = scalar_select %p392, %s31, 1
      %s394 = smul.addr %s391, 2
      %s395 = sadd.s32 %s393, %s394
      %s396 = smul.addr %s395, 8
      %s397 = scalar_lea.vmem %s2, %s396
      %p398 = scmp.lt.s32.totalorder %s31, 0
      %s399 = scalar_select %p398, %s31, 0
      %p400 = scmp.lt.s32.totalorder %s30, 1
      %s401 = scalar_select %p400, %s30, 1
      %p402 = scmp.lt.s32.totalorder %s399, 0
      %s403 = scalar_select %p402, %s399, 0
      %s404 = sadd.s32 %s403, %s401
      %s405 = smul.addr %s404, 8
      %s406 = scalar_lea.vmem %s3, %s405
      %p407 = scmp.lt.s32.totalorder %s31, 0
      %s408 = scalar_select %p407, %s31, 0
      %p409 = scmp.lt.s32.totalorder %s31, 0
      %s410 = scalar_select %p409, %s31, 0
      %p411 = scmp.lt.s32.totalorder %s30, 1
      %s412 = scalar_select %p411, %s30, 1
      %p413 = scmp.lt.s32.totalorder %s410, 0
      %s414 = scalar_select %p413, %s410, 0
      %s415 = sadd.s32 %s414, %s412
      %s416 = smul.addr %s415, 8
      %s417 = scalar_lea.vmem %s4, %s416
      %p418 = scmp.lt.s32.totalorder %s31, 0
      %s419 = scalar_select %p418, %s31, 0
      %p420 = scmp.lt.s32.totalorder %s30, 1
      %s421 = scalar_select %p420, %s30, 1
      %p422 = scmp.lt.s32.totalorder %s31, 1
      %s423 = scalar_select %p422, %s31, 1
      %s424 = smul.addr %s421, 2
      %s425 = sadd.s32 %s423, %s424
      %s426 = smul.addr %s425, 8
      %s427 = scalar_lea.vmem %s9, %s426
      %s428 = smul.u32 %s31, 8
      %p429 = scmp.lt.s32.totalorder %s428, 11
      %s430 = scalar_select %p429, %s428, 11
      %s431 = sshra.s32 %s430, 7
      %s432 = sand.u32 %s430, 127
      %s433 = sadd.s32 %s431, %s30
      %s434 = smul.u32 %s433, 128
      %s435 = sshra.s32 %s430, 7
      %s436 = sand.u32 %s430, 127
      %s437 = sadd.s32 %s434, %s436
      %s438 = sld [smem:[#allocation4 + %s437]]
      %p439 = scmp.gt.s32.totalorder %s438, 0
      %s440 = scalar_select %p439, %s438, 0
      %p441 = scmp.lt.s32.totalorder %s440, 63
      %s442 = scalar_select %p441, %s440, 63
      %s443 = scalar_lea.vmem %s1, %s442
      %v444 = vld [vmem:[%s443] sm:$0x1]
      %vm445 = vcmask 516096
      %446 = vst.msk [vmem:[#allocation2] sm:$0x1] %vm445, %v444
      %s447 = sadd.s32 %s428, 1
      %p448 = scmp.lt.s32.totalorder %s447, 11
      %s449 = scalar_select %p448, %s447, 11
      %s450 = sshra.s32 %s449, 7
      %s451 = sand.u32 %s449, 127
      %s452 = sadd.s32 %s450, %s30
      %s453 = smul.u32 %s452, 128
      %s454 = sshra.s32 %s449, 7
      %s455 = sand.u32 %s449, 127
      %s456 = sadd.s32 %s453, %s455
      %s457 = sld [smem:[#allocation4 + %s456]]
      %p458 = scmp.gt.s32.totalorder %s457, 0
      %s459 = scalar_select %p458, %s457, 0
      %p460 = scmp.lt.s32.totalorder %s459, 63
      %s461 = scalar_select %p460, %s459, 63
      %s462 = scalar_lea.vmem %s1, %s461
      %v463 = vld [vmem:[%s462] sm:$0x1]
      %464 = vst.msk [vmem:[#allocation2 + $0x1] sm:$0x1] %vm445, %v463
      %s465 = sadd.s32 %s428, 2
      %p466 = scmp.lt.s32.totalorder %s465, 11
      %s467 = scalar_select %p466, %s465, 11
      %s468 = sshra.s32 %s467, 7
      %s469 = sand.u32 %s467, 127
      %s470 = sadd.s32 %s468, %s30
      %s471 = smul.u32 %s470, 128
      %s472 = sshra.s32 %s467, 7
      %s473 = sand.u32 %s467, 127
      %s474 = sadd.s32 %s471, %s473
      %s475 = sld [smem:[#allocation4 + %s474]]
      %p476 = scmp.gt.s32.totalorder %s475, 0
      %s477 = scalar_select %p476, %s475, 0
      %p478 = scmp.lt.s32.totalorder %s477, 63
      %s479 = scalar_select %p478, %s477, 63
      %s480 = scalar_lea.vmem %s1, %s479
      %v481 = vld [vmem:[%s480] sm:$0x1]
      %482 = vst.msk [vmem:[#allocation2 + $0x2] sm:$0x1] %vm445, %v481
      %s483 = sadd.s32 %s428, 3
      %p484 = scmp.lt.s32.totalorder %s483, 11
      %s485 = scalar_select %p484, %s483, 11
      %s486 = sshra.s32 %s485, 7
      %s487 = sand.u32 %s485, 127
      %s488 = sadd.s32 %s486, %s30
      %s489 = smul.u32 %s488, 128
      %s490 = sshra.s32 %s485, 7
      %s491 = sand.u32 %s485, 127
      %s492 = sadd.s32 %s489, %s491
      %s493 = sld [smem:[#allocation4 + %s492]]
      %p494 = scmp.gt.s32.totalorder %s493, 0
      %s495 = scalar_select %p494, %s493, 0
      %p496 = scmp.lt.s32.totalorder %s495, 63
      %s497 = scalar_select %p496, %s495, 63
      %s498 = scalar_lea.vmem %s1, %s497
      %v499 = vld [vmem:[%s498] sm:$0x1]
      %500 = vst.msk [vmem:[#allocation2 + $0x3] sm:$0x1] %vm445, %v499
      %s501 = sadd.s32 %s428, 4
      %p502 = scmp.lt.s32.totalorder %s501, 11
      %s503 = scalar_select %p502, %s501, 11
      %s504 = sshra.s32 %s503, 7
      %s505 = sand.u32 %s503, 127
      %s506 = sadd.s32 %s504, %s30
      %s507 = smul.u32 %s506, 128
      %s508 = sshra.s32 %s503, 7
      %s509 = sand.u32 %s503, 127
      %s510 = sadd.s32 %s507, %s509
      %s511 = sld [smem:[#allocation4 + %s510]]
      %p512 = scmp.gt.s32.totalorder %s511, 0
      %s513 = scalar_select %p512, %s511, 0
      %p514 = scmp.lt.s32.totalorder %s513, 63
      %s515 = scalar_select %p514, %s513, 63
      %s516 = scalar_lea.vmem %s1, %s515
      %v517 = vld [vmem:[%s516] sm:$0x1]
      %518 = vst.msk [vmem:[#allocation2 + $0x4] sm:$0x1] %vm445, %v517
      %s519 = sadd.s32 %s428, 5
      %p520 = scmp.lt.s32.totalorder %s519, 11
      %s521 = scalar_select %p520, %s519, 11
      %s522 = sshra.s32 %s521, 7
      %s523 = sand.u32 %s521, 127
      %s524 = sadd.s32 %s522, %s30
      %s525 = smul.u32 %s524, 128
      %s526 = sshra.s32 %s521, 7
      %s527 = sand.u32 %s521, 127
      %s528 = sadd.s32 %s525, %s527
      %s529 = sld [smem:[#allocation4 + %s528]]
      %p530 = scmp.gt.s32.totalorder %s529, 0
      %s531 = scalar_select %p530, %s529, 0
      %p532 = scmp.lt.s32.totalorder %s531, 63
      %s533 = scalar_select %p532, %s531, 63
      %s534 = scalar_lea.vmem %s1, %s533
      %v535 = vld [vmem:[%s534] sm:$0x1]
      %536 = vst.msk [vmem:[#allocation2 + $0x5] sm:$0x1] %vm445, %v535
      %s537 = sadd.s32 %s428, 6
      %p538 = scmp.lt.s32.totalorder %s537, 11
      %s539 = scalar_select %p538, %s537, 11
      %s540 = sshra.s32 %s539, 7
      %s541 = sand.u32 %s539, 127
      %s542 = sadd.s32 %s540, %s30
      %s543 = smul.u32 %s542, 128
      %s544 = sshra.s32 %s539, 7
      %s545 = sand.u32 %s539, 127
      %s546 = sadd.s32 %s543, %s545
      %s547 = sld [smem:[#allocation4 + %s546]]
      %p548 = scmp.gt.s32.totalorder %s547, 0
      %s549 = scalar_select %p548, %s547, 0
      %p550 = scmp.lt.s32.totalorder %s549, 63
      %s551 = scalar_select %p550, %s549, 63
      %s552 = scalar_lea.vmem %s1, %s551
      %v553 = vld [vmem:[%s552] sm:$0x1]
      %554 = vst.msk [vmem:[#allocation2 + $0x6] sm:$0x1] %vm445, %v553
      %s555 = sadd.s32 %s428, 7
      %p556 = scmp.lt.s32.totalorder %s555, 11
      %s557 = scalar_select %p556, %s555, 11
      %s558 = sshra.s32 %s557, 7
      %s559 = sand.u32 %s557, 127
      %s560 = sadd.s32 %s558, %s30
      %s561 = smul.u32 %s560, 128
      %s562 = sshra.s32 %s557, 7
      %s563 = sand.u32 %s557, 127
      %s564 = sadd.s32 %s561, %s563
      %s565 = sld [smem:[#allocation4 + %s564]]
      %p566 = scmp.gt.s32.totalorder %s565, 0
      %s567 = scalar_select %p566, %s565, 0
      %p568 = scmp.lt.s32.totalorder %s567, 63
      %s569 = scalar_select %p568, %s567, 63
      %s570 = scalar_lea.vmem %s1, %s569
      %v571 = vld [vmem:[%s570] sm:$0x1]
      %572 = vst.msk [vmem:[#allocation2 + $0x7] sm:$0x1] %vm445, %v571
      %v573 = vlaneseq
      %v574 = vshrl.u32 %v573, 7
      %v575 = vstv %s428
      %v576 = vadd.s32 %v575, %v574
      %vm577 = vcmp.lt.s32.totalorder %v576, 12
      %v578 = vld [vmem:[%s397] sm:$0xff]
      %v579 = vsel %vm577, %v578, 0.0
      %v580 = vld [vmem:[#allocation2] sm:$0xff]
      %v581 = vld [vmem:[%s5] sm:$0xff]
      %v582 = vld [vmem:[%s5 + $0x8] sm:$0xff]
      %v583 = vld [vmem:[%s5 + $0x10] sm:$0xff]
      %v584 = vld [vmem:[%s5 + $0x18] sm:$0xff]
      %v585 = vld [vmem:[%s5 + $0x20] sm:$0xff]
      %v586 = vld [vmem:[%s5 + $0x28] sm:$0xff]
      %v587 = vld [vmem:[%s5 + $0x30] sm:$0xff]
      %v588 = vld [vmem:[%s5 + $0x38] sm:$0xff]
      %v589 = vld [vmem:[%s6] sm:$0x1]
      %v591 = vlaneseq
      %v592 = vshrl.u32 %v591, 7
      %v593 = vsub.s32 0, %v592
      %v594 = vrot.slane %v589, %v593
      %vm596 = vcmask 523264
      %v598 = vsel %vm596, %v580, 0
      %600 = vmatprep.subr.mxu0 0.0
      %601 = vmatpush1.msra.mxu0 0.0
      %602 = vmatprep.subr.mxu0 0.0
      %603 = vmatpush1.msra.mxu0 0.0
      %604 = vmatprep.subr.mxu0 0.0
      %605 = vmatpush1.msra.mxu0 0.0
      %606 = vmatprep.subr.mxu0 0.0
      %607 = vmatpush1.msra.mxu0 0.0
      %608 = vmatprep.subr.mxu0 0.0
      %609 = vmatpush1.msra.mxu0 0.0
      %610 = vmatprep.subr.mxu0 0.0
      %611 = vmatpush1.msra.mxu0 0.0
      %612 = vmatprep.subr.mxu0 0.0
      %613 = vmatpush1.msra.mxu0 0.0
      %614 = vmatprep.subr.mxu0 0.0
      %615 = vmatpush1.msra.mxu0 0.0
      %616 = vmatprep.subr.mxu0 0.0
      %617 = vmatpush1.msra.mxu0 %v588
      %618 = vmatprep.subr.mxu0 0.0
      %619 = vmatpush1.msra.mxu0 %v587
      %620 = vmatprep.subr.mxu0 0.0
      %621 = vmatpush1.msra.mxu0 %v586
      %622 = vmatprep.subr.mxu0 0.0
      %623 = vmatpush1.msra.mxu0 %v585
      %624 = vmatprep.subr.mxu0 0.0
      %625 = vmatpush1.msra.mxu0 %v584
      %626 = vmatprep.subr.mxu0 0.0
      %627 = vmatpush1.msra.mxu0 %v583
      %628 = vmatprep.subr.mxu0 0.0
      %629 = vmatpush1.msra.mxu0 %v582
      %630 = vmatprep.subr.mxu0 0.0
      %631 = vmatpush1.msra.mxu0 %v581
      %632 = vmatprep.subr.mxu0 0.0
      %633 = vmatpush2.msra.mxu0 0.0
      %634 = vmatprep.subr.mxu0 0.0
      %635 = vmatpush2.msra.mxu0 0.0
      %636 = vmatprep.subr.mxu0 0.0
      %637 = vmatpush2.msra.mxu0 0.0
      %638 = vmatprep.subr.mxu0 0.0
      %639 = vmatpush2.msra.mxu0 0.0
      %640 = vmatprep.subr.mxu0 0.0
      %641 = vmatpush2.msra.mxu0 0.0
      %642 = vmatprep.subr.mxu0 0.0
      %643 = vmatpush2.msra.mxu0 0.0
      %644 = vmatprep.subr.mxu0 0.0
      %645 = vmatpush2.msra.mxu0 0.0
      %646 = vmatprep.subr.mxu0 0.0
      %647 = vmatpush2.msra.mxu0 0.0
      %648 = vmatprep.subr.mxu0 0.0
      %649 = vmatpush2.msra.mxu0 0.0
      %650 = vmatprep.subr.mxu0 0.0
      %651 = vmatpush2.msra.mxu0 0.0
      %652 = vmatprep.subr.mxu0 0.0
      %653 = vmatpush2.msra.mxu0 0.0
      %654 = vmatprep.subr.mxu0 0.0
      %655 = vmatpush2.msra.mxu0 0.0
      %656 = vmatprep.subr.mxu0 0.0
      %657 = vmatpush2.msra.mxu0 0.0
      %658 = vmatprep.subr.mxu0 0.0
      %659 = vmatpush2.msra.mxu0 0.0
      %660 = vmatprep.subr.mxu0 0.0
      %661 = vmatpush2.msra.mxu0 0.0
      %662 = vmatprep.subr.mxu0 0.0
      %663 = vmatpush2.msra.mxu0 0.0
      %664 = vmatprep.mubr.f32.mxu0 0.0
      %665 = vmatmul.mubr.f32.gmra.mxu0 %v598
      %v666 = vpop.f32.mrf.mxu0
      %v667 = vadd.f32 %v594, %v666
      %v668 = vpop.f32.mrf.mxu0
      %669 = vdwg.mxu0
      %671 = vset.pattern.permute.xlu0 0
      %672 = vperm.xlu0 %671, %v579
      %v673 = vpop.permute.xlu0 %672
      %v675 = vmul.f32 %v667, %v673
      %vm676 = vcmask 261120
      %v677 = vsel %vm676, %v675, 0.0
      %678 = vadd.xlane.f32.xlu0 %v677
      %v679 = vpop.xlane.xlu0 %678
      %v680 = vrcp.pop 32.0
      %v681 = vmul.f32 %v679, %v680
      %v682 = vsub.f32 %v675, %v681
      %v683 = vmul.f32 %v682, %v682
      %v684 = vsel %vm676, %v683, 0.0
      %685 = vadd.xlane.f32.xlu0 %v684
      %v686 = vpop.xlane.xlu0 %685
      %v687 = vmul.f32 %v686, %v680
      %v688 = vadd.f32 %v687, 1e-06
      %v689 = vrsqrt.pop %v688
      %v690 = vmul.f32 %v682, %v689
      %v691 = vld [vmem:[%s7] sm:$0x1]
      %v693 = vlaneseq
      %v694 = vshrl.u32 %v693, 7
      %v695 = vsub.s32 0, %v694
      %v696 = vrot.slane %v691, %v695
      %v698 = vmul.f32 %v690, %v696
      %v699 = vld [vmem:[%s8] sm:$0x1]
      %v701 = vlaneseq
      %v702 = vshrl.u32 %v701, 7
      %v703 = vsub.s32 0, %v702
      %v704 = vrot.slane %v699, %v703
      %v706 = vadd.f32 %v698, %v704
      %p707 = scmp.lt.s32.totalorder %s428, 8
      // Predicated region
      $region53: #{tpu_custom_call.1} parent=51 // pred_check
        %p708 = pneg %p707
      $region54: #{tpu_custom_call.1} parent=51 // pred_check_branch
        %710 = sbr.rel (%p708) target = $region56
      $region55: #{tpu_custom_call.1} parent=51 // pred_region
        %vm711 = vcmp.lt.s32.totalorder %v576, 8
        %v712 = vld [vmem:[%s406] sm:$0xff]
        %v713 = vld [vmem:[%s417] sm:$0xff]
        %715 = vset.pattern.permute.xlu0 0
        %716 = vperm.xlu0 %715, %v713
        %v717 = vpop.permute.xlu0 %716
        %v719 = vmul.f32 %v712, %v717
        %v720 = vsel %vm711, 1, 0
        %vm721 = vcmp.eq.s32.totalorder %v720, 1
        %v722 = vsel %vm721, %v719, 0.0
        %v723 = vadd.f32 %v706, %v722
        %724 = vst.msk [vmem:[%s427] sm:$0xff] %vm676, %v723
      $region56: #{tpu_custom_call.1} parent=51 // pred_fallthru
        _
      %p725 = scmp.ge.s32.totalorder %s428, 8
      // Predicated region
      $region57: #{tpu_custom_call.1} parent=51 // pred_check
        %p726 = pneg %p725
      $region58: #{tpu_custom_call.1} parent=51 // pred_check_branch
        %728 = sbr.rel (%p726) target = $region60
      $region59: #{tpu_custom_call.1} parent=51 // pred_region
        %729 = vst.msk [vmem:[%s427] sm:$0xff] %vm676, %v706
      $region60: #{tpu_custom_call.1} parent=51 // pred_fallthru
        _
      %p730 = scmp.lt.s32.totalorder %s30, 1
      %s731 = scalar_select %p730, %s30, 1
      %p732 = scmp.lt.s32.totalorder %s31, 1
      %s733 = scalar_select %p732, %s31, 1
      %s734 = smul.addr %s731, 2
      %s735 = sadd.s32 %s733, %s734
      %s736 = smul.addr %s735, 8
      %s737 = scalar_lea.vmem %s9, %s736
      // Predicated region
      $region61: #{tpu_custom_call.1} parent=51 // pred_check
        %p738 = pneg %p255
      $region62: #{tpu_custom_call.1} parent=51 // pred_check_branch
        %740 = sbr.rel (%p738) target = $region64
      $region63: #{tpu_custom_call.1} parent=51 // pred_region
        _
      $region64: #{tpu_custom_call.1} parent=51 // pred_fallthru
        _
    $region52: #{tpu_custom_call.1} parent=5 // pred_fallthru
      _
    %p741 = scmp.le.s32.totalorder 2, %s21
    // Predicated region
    $region65: #{tpu_custom_call.1} parent=5 // pred_check
      %p742 = pneg %p741
    $region66: #{tpu_custom_call.1} parent=5 // pred_check_branch
      %744 = sbr.rel (%p742) target = $region68
    $region67: #{tpu_custom_call.1} parent=5 // pred_region
      %s745 = ssub.s32 %s21, 2
      // Predicated region
      $region69: #{tpu_custom_call.1} parent=67 // pred_check
        %p746 = pneg %p261
      $region70: #{tpu_custom_call.1} parent=67 // pred_check_branch
        %748 = sbr.rel (%p746) target = $region72
      $region71: #{tpu_custom_call.1} parent=67 // pred_region
        %p749 = scmp.lt.s32.totalorder %s32, 1
        %s750 = scalar_select %p749, %s32, 1
        %p751 = scmp.lt.s32.totalorder %s33, 1
        %s752 = scalar_select %p751, %s33, 1
        %s753 = smul.addr %s750, 2
        %s754 = sadd.s32 %s752, %s753
        %s755 = smul.addr %s754, 8
        %s756 = scalar_lea.vmem %s9, %s755
      $region72: #{tpu_custom_call.1} parent=67 // pred_fallthru
        _
    $region68: #{tpu_custom_call.1} parent=5 // pred_fallthru
      _
  $region6: #{tpu_custom_call.1} parent=0 // loop_footer
    %s25 = sadd.s32 1, %s21
  $region7: #{tpu_custom_call.1} parent=0 // loop_footer_branch
    %20 = sbr.rel target = $region3
  $region8: #{tpu_custom_call.1} parent=0 // loop_exit
    _

</llo_original>
